<compile_context>
chip_gen: v6e
topology: v6e:2x2x1
jax: 0.10.0
libtpu: 0.0.40
codegen_flags: <defaults>
</compile_context>

<pallas_src>
import jax
import jax.numpy as jnp
from jax.experimental import pallas as pl
from jax.experimental.pallas import tpu as pltpu


def _round_up(x, m):
    return (x + m - 1) // m * m


def _pick_tile(n_pad, target):
    """Largest multiple of 128 that divides n_pad and is <= max(target, 128)."""
    target = max(target, 128)
    m = n_pad // 128
    best = 1
    for d in range(1, m + 1):
        if m % d == 0 and 128 * d <= target:
            best = d
    return 128 * best


# ----------------------------------------------------------------------------
# Kernels
# ----------------------------------------------------------------------------
def gcn_layer1_kernel(a_ref, z1_ref, scale_ref, b1_ref, w2_ref, z2_ref, acc_ref):
    """Layer-1 aggregation + bias + ReLU with the layer-2 linear fused into the
    reduction finalize:
        z2[i] = relu(scale[i] * sum_k A_q[i,k] @ z1[k] + b1) @ W2
    A_q is the int8-quantized normalized adjacency; scale is its per-row
    dequantization scale (folded into the f32 accumulator at finalize)."""
    k = pl.program_id(1)

    @pl.when(k == 0)
    def _():
        acc_ref[...] = jnp.zeros_like(acc_ref)

    acc_ref[...] += jnp.dot(a_ref[...].astype(jnp.bfloat16), z1_ref[...],
                            preferred_element_type=jnp.float32)

    @pl.when(k == pl.num_programs(1) - 1)
    def _():
        h = jnp.maximum(acc_ref[...] * scale_ref[...] + b1_ref[...], 0.0)
        # W2 is tiny (128x128, once per row tile) -> keep it f32 to avoid an
        # extra bf16 rounding of h.
        z2_ref[...] = jnp.dot(h, w2_ref[...],
                              preferred_element_type=jnp.float32
                              ).astype(z2_ref.dtype)


def gcn_layer2_kernel(a_ref, z2_ref, scale_ref, b2_ref, o_ref, acc_ref):
    """Layer-2 aggregation:  out[i] = scale[i] * sum_k A_q[i,k] @ z2[k] + b2."""
    k = pl.program_id(1)

    @pl.when(k == 0)
    def _():
        acc_ref[...] = jnp.zeros_like(acc_ref)

    acc_ref[...] += jnp.dot(a_ref[...].astype(jnp.bfloat16), z2_ref[...],
                            preferred_element_type=jnp.float32)

    @pl.when(k == pl.num_programs(1) - 1)
    def _():
        o_ref[...] = acc_ref[...] * scale_ref[...] + b2_ref[...]


# ----------------------------------------------------------------------------
# Graph densification (GCNConv symmetric normalization with self-loops)
# ----------------------------------------------------------------------------
def build_norm_adj(edge_index, edge_weight, num_nodes, padded_nodes=None):
    """Dense A_hat = D^{-1/2}(A + I)D^{-1/2}, aggregation at the target node.
    Scatter-adds directly into a (padded_nodes, padded_nodes) f32 buffer."""
    padded_nodes = num_nodes if padded_nodes is None else padded_nodes
    row, col = edge_index[0], edge_index[1]
    if edge_weight is None:
        edge_weight = jnp.ones(row.shape[0], dtype=jnp.float32)
    loop = jnp.arange(num_nodes, dtype=edge_index.dtype)
    row = jnp.concatenate([row, loop])
    col = jnp.concatenate([col, loop])
    w = jnp.concatenate([edge_weight.astype(jnp.float32),
                         jnp.ones(num_nodes, dtype=jnp.float32)])
    deg = jnp.zeros((num_nodes,), jnp.float32).at[col].add(w)
    dis = jnp.where(deg > 0, jax.lax.rsqrt(deg), 0.0)
    norm = dis[row] * w * dis[col]
    # message x[row] aggregated at col  =>  A_hat[col, row] += norm
    return jnp.zeros((padded_nodes, padded_nodes), jnp.float32).at[col, row].add(norm)


# ----------------------------------------------------------------------------
# Forward wrapper
# ----------------------------------------------------------------------------
def synaptic_gnn(x, edge_index, params, edge_weight=None):
    n, f_in = x.shape
    w1, b1, w2, b2 = params
    hidden = w1.shape[1]
    n_out = w2.shape[1]

    # lane-dense feature padding; node padding only to 128 (not to the tile)
    h_pad = _round_up(hidden, 128)
    o_pad = _round_up(n_out, 128)
    n_pad = _round_up(n, 128)

    # Generation-aware VMEM budget (v5e/v6e: 128 MiB, v7x: 64 MiB physical).
    try:
        vmem_cap = int(pltpu.get_tpu_info().vmem_capacity_bytes)
    except Exception:
        vmem_cap = 64 * 1024 * 1024  # conservative: v7x physical size
    vmem_limit = min(int(vmem_cap * 3 // 4), 112 * 1024 * 1024)

    # Tiles must divide n_pad.  tk > tm amortizes accumulator RMW + per-step
    # overhead; tm <= n_pad/2 keeps >= 2 row tiles for v7x megacore sharding.
    tk_target = 4096 if vmem_cap >= (96 << 20) else 2048
    tm_target = min(1024, max(128, n_pad // 2))
    tm = _pick_tile(n_pad, tm_target)
    tk = _pick_tile(n_pad, tk_target)
    grid_rows = n_pad // tm
    grid_cols = n_pad // tk
    a_bufs = max(2, min(3, grid_cols))  # deeper A pipelining when it can help

    # ---- parameters / inputs (padded, lane-dense) --------------------------
    x_p = jnp.zeros((n_pad, f_in), jnp.float32).at[:n, :].set(
        x.astype(jnp.float32))
    w1_p = jnp.zeros((f_in, h_pad), jnp.float32).at[:, :hidden].set(
        w1.astype(jnp.float32))
    b1_p = jnp.zeros((1, h_pad), jnp.float32).at[:, :hidden].set(
        b1.reshape(1, -1).astype(jnp.float32))
    w2_p = jnp.zeros((h_pad, o_pad), jnp.float32).at[:hidden, :n_out].set(
        w2.astype(jnp.float32))
    b2_p = jnp.zeros((1, o_pad), jnp.float32).at[:, :n_out].set(
        b2.reshape(1, -1).astype(jnp.float32))

    # ---- normalized adjacency: padded scatter-add + single int8 cast -------
    a_f32 = build_norm_adj(edge_index, edge_weight, n, n_pad)   # (n_pad, n_pad)
    row_max = jnp.max(jnp.abs(a_f32), axis=1, keepdims=True)    # (n_pad, 1)
    a_scale = (jnp.maximum(row_max, 1e-30) / 127.0).astype(jnp.float32)
    a_q = jnp.round(a_f32 / a_scale).astype(jnp.int8)           # (n_pad, n_pad)

    # ---- z1 = X @ W1 : negligible work, no kernel launch -------------------
    z1 = (x_p @ w1_p).astype(jnp.bfloat16)                      # (n_pad, h_pad)

    cparams = pltpu.CompilerParams(
        dimension_semantics=("parallel", "arbitrary"),
        vmem_limit_bytes=vmem_limit)

    # ---- layer 1: z2 = relu(A_hat @ z1 + b1) @ W2 ---------------------------
    cost1 = pl.CostEstimate(
        flops=2 * n_pad * n_pad * h_pad + 2 * n_pad * h_pad * o_pad,
        transcendentals=0,
        bytes_accessed=(n_pad * n_pad                        # A_q (int8)
                        + grid_rows * n_pad * h_pad * 2      # z1 re-reads (bf16)
                        + n_pad * o_pad * 2))                # z2 write (bf16)
    z2 = pl.pallas_call(
        gcn_layer1_kernel,
        out_shape=jax.ShapeDtypeStruct((n_pad, o_pad), jnp.bfloat16),
        grid=(grid_rows, grid_cols),
        in_specs=[
            pl.BlockSpec((tm, tk), lambda i, k: (i, k),          # A_q tile
                         pipeline_mode=pl.Buffered(a_bufs)),
            pl.BlockSpec((tk, h_pad), lambda i, k: (k, 0)),      # z1 streamed
            pl.BlockSpec((tm, 1), lambda i, k: (i, 0)),          # per-row scale
            pl.BlockSpec((1, h_pad), lambda i, k: (0, 0),        # b1 (constant)
                         pipeline_mode=pl.Buffered(1)),
            pl.BlockSpec((h_pad, o_pad), lambda i, k: (0, 0),    # W2 (constant)
                         pipeline_mode=pl.Buffered(1)),
        ],
        out_specs=pl.BlockSpec((tm, o_pad), lambda i, k: (i, 0)),
        scratch_shapes=[pltpu.VMEM((tm, h_pad), jnp.float32)],
        compiler_params=cparams,
        cost_estimate=cost1,
    )(a_q, z1, a_scale, b1_p, w2_p)

    # ---- layer 2: out = A_hat @ z2 + b2 -------------------------------------
    cost2 = pl.CostEstimate(
        flops=2 * n_pad * n_pad * o_pad,
        transcendentals=0,
        bytes_accessed=(n_pad * n_pad
                        + grid_rows * n_pad * o_pad * 2
                        + n_pad * o_pad * 4))
    out_p = pl.pallas_call(
        gcn_layer2_kernel,
        out_shape=jax.ShapeDtypeStruct((n_pad, o_pad), jnp.float32),
        grid=(grid_rows, grid_cols),
        in_specs=[
            pl.BlockSpec((tm, tk), lambda i, k: (i, k),          # A_q tile
                         pipeline_mode=pl.Buffered(a_bufs)),
            pl.BlockSpec((tk, o_pad), lambda i, k: (k, 0)),      # z2 streamed
            pl.BlockSpec((tm, 1), lambda i, k: (i, 0)),          # per-row scale
            pl.BlockSpec((1, o_pad), lambda i, k: (0, 0),        # b2 (constant)
                         pipeline_mode=pl.Buffered(1)),
        ],
        out_specs=pl.BlockSpec((tm, o_pad), lambda i, k: (i, 0)),
        scratch_shapes=[pltpu.VMEM((tm, o_pad), jnp.float32)],
        compiler_params=cparams,
        cost_estimate=cost2,
    )(a_q, z2, a_scale, b2_p)

    # Padded rows (>= n) contain bias-only garbage; slice them off here.
    return out_p[:n, :n_out]


# ----------------------------------------------------------------------------
# Pure-JAX f32 reference (mirrors PyTorch/PyG GCNConv semantics)
# ----------------------------------------------------------------------------
def reference_forward(x, edge_index, params, edge_weight=None):
    w1, b1, w2, b2 = params
    a_hat = build_norm_adj(edge_index, edge_weight, x.shape[0])
    h = a_hat @ (x @ w1) + b1.reshape(1, -1)
    h = jnp.maximum(h, 0.0)
    return a_hat @ (h @ w2) + b2.reshape(1, -1)


if __name__ == "__main__":
    key = jax.random.PRNGKey(0)
    N, E = 16, 48                       # 16 nodes, 48 directed edges
    in_channels, hidden_dim, out_channels = 4, 32, 1

    k_x, k_src, k_dst, k_ew, k_w1, k_w2 = jax.random.split(key, 6)
    x = jax.random.normal(k_x, (N, in_channels), dtype=jnp.float32)
    src = jax.random.randint(k_src, (E,), 0, N, dtype=jnp.int32)
    dst = jax.random.randint(k_dst, (E,), 0, N, dtype=jnp.int32)
    edge_index = jnp.stack([src, dst], axis=0)                   # [2, E]
    edge_weight = jax.random.uniform(k_ew, (E,), jnp.float32, 0.5, 1.5)

    # GCNConv params: lin weight [in, out], bias [out] (applied post-aggregate).
    w1 = (jax.random.normal(k_w1, (in_channels, hidden_dim), jnp.float32)
          / jnp.sqrt(jnp.float32(in_channels)))
    b1 = (0.01 * jnp.arange(hidden_dim, dtype=jnp.float32)).reshape(1, hidden_dim)
    w2 = (jax.random.normal(k_w2, (hidden_dim, out_channels), jnp.float32)
          / jnp.sqrt(jnp.float32(hidden_dim)))
    b2 = 0.05 * jnp.ones((1, out_channels), jnp.float32)
    params = (w1, b1, w2, b2)

    out = jax.jit(synaptic_gnn)(x, edge_index, params, edge_weight)
    out = jax.block_until_ready(out)
    assert out.shape == (N, out_channels), out.shape

    ref = reference_forward(x, edge_index, params, edge_weight)
    # Tolerance reflects per-row int8 A_hat + bf16 activations (f32 accumulation).
    err = float(jnp.max(jnp.abs(out - ref)))
    assert jnp.allclose(out, ref, atol=7.5e-2, rtol=5e-2), err

    print("KERNEL_OK")
</pallas_src>

<mosaic_0001>
module attributes {stable_mosaic.version = 11 : i64} {
  func.func private @main(%arg0: i32) attributes {dimension_semantics = [#tpu.dimension_semantics<core_parallel>], iteration_bounds = array<i64: 2>, tpu.core_type = #tpu.core_type<sc_scalar_subcore>, window_params = []} {
    return
  }
}

module attributes {stable_mosaic.version = 11 : i64} {
  func.func private @main(%arg0: i32) attributes {dimension_semantics = [#tpu.dimension_semantics<core_parallel>], iteration_bounds = array<i64: 2>, tpu.core_type = #tpu.core_type<sc_scalar_subcore>, window_params = []} {
    return
  }
}

module attributes {stable_mosaic.version = 11 : i64} {
  func.func @gcn_layer2_kernel(%arg0: i32, %arg1: i32, %arg2: memref<128x128xi8, #tpu.memory_space<vmem>>, %arg3: memref<128x128xbf16, #tpu.memory_space<vmem>>, %arg4: memref<128x1xf32, #tpu.memory_space<vmem>>, %arg5: memref<1x128xf32, #tpu.memory_space<vmem>>, %arg6: memref<128x128xf32, #tpu.memory_space<vmem>>, %arg7: memref<128x128xf32, #tpu.memory_space<vmem>>) attributes {dimension_semantics = [#tpu.dimension_semantics<parallel>, #tpu.dimension_semantics<arbitrary>], iteration_bounds = array<i64: 1, 1>, scalar_prefetch = 0 : i64, scratch_operands = 1 : i64, tpu.core_type = #tpu.core_type<tc>, window_params = [{pipeline_mode = #tpu.pipeline_mode<double_buffered>, transform_indices = @transform_0, window_bounds = array<i64: 128, 128>}, {transform_indices = @transform_1, window_bounds = array<i64: 128, 128>}, {transform_indices = @transform_2, window_bounds = array<i64: 128, 1>}, {pipeline_mode = #tpu.pipeline_mode<synchronous>, transform_indices = @transform_3, window_bounds = array<i64: 1, 128>}, {transform_indices = @transform_4, window_bounds = array<i64: 128, 128>}]} {
    %c0_i32 = arith.constant 0 : i32
    %0 = arith.cmpi eq, %arg1, %c0_i32 : i32
    %1 = arith.extui %0 : i1 to i32
    %c0_i32_0 = arith.constant 0 : i32
    %2 = arith.cmpi ne, %1, %c0_i32_0 : i32
    scf.if %2 {
      %cst_10 = arith.constant 0.000000e+00 : f32
      %13 = vector.broadcast %cst_10 : f32 to vector<128x128xf32>
      %c0_11 = arith.constant 0 : index
      %c0_12 = arith.constant 0 : index
      %14 = vector.load %arg7[%c0_11, %c0_12] : memref<128x128xf32, #tpu.memory_space<vmem>>, vector<128x128xf32>
      tpu.vector_store %arg7[%c0_11, %c0_12], %13 {strides = array<i32>} : memref<128x128xf32, #tpu.memory_space<vmem>>, vector<128x128xf32>,
    } else {
    }
    %c0 = arith.constant 0 : index
    %c0_1 = arith.constant 0 : index
    %3 = vector.load %arg7[%c0, %c0_1] : memref<128x128xf32, #tpu.memory_space<vmem>>, vector<128x128xf32>
    %c0_2 = arith.constant 0 : index
    %c0_3 = arith.constant 0 : index
    %4 = vector.load %arg2[%c0_2, %c0_3] : memref<128x128xi8, #tpu.memory_space<vmem>>, vector<128x128xi8>
    %5 = arith.sitofp %4 : vector<128x128xi8> to vector<128x128xbf16>
    %c0_4 = arith.constant 0 : index
    %c0_5 = arith.constant 0 : index
    %6 = vector.load %arg3[%c0_4, %c0_5] : memref<128x128xbf16, #tpu.memory_space<vmem>>, vector<128x128xbf16>
    %cst = arith.constant dense<0.000000e+00> : vector<128x128xf32>
    %7 = tpu.matmul %5, %6, %cst {dimension_numbers = #tpu.dot_dimension_numbers<[1], [0], [0], [1], [0, 0, 1, 1], [], []>} : vector<128x128xbf16>, vector<128x128xbf16>, vector<128x128xf32> -> vector<128x128xf32>
    %8 = arith.addf %3, %7 : vector<128x128xf32>
    %c0_6 = arith.constant 0 : index
    %c0_7 = arith.constant 0 : index
    %9 = vector.load %arg7[%c0_6, %c0_7] : memref<128x128xf32, #tpu.memory_space<vmem>>, vector<128x128xf32>
    tpu.vector_store %arg7[%c0_6, %c0_7], %8 {strides = array<i32>} : memref<128x128xf32, #tpu.memory_space<vmem>>, vector<128x128xf32>,
    %c0_i32_8 = arith.constant 0 : i32
    %10 = arith.cmpi eq, %arg1, %c0_i32_8 : i32
    %11 = arith.extui %10 : i1 to i32
    %c0_i32_9 = arith.constant 0 : i32
    %12 = arith.cmpi ne, %11, %c0_i32_9 : i32
    scf.if %12 {
      %c0_10 = arith.constant 0 : index
      %c0_11 = arith.constant 0 : index
      %13 = vector.load %arg7[%c0_10, %c0_11] : memref<128x128xf32, #tpu.memory_space<vmem>>, vector<128x128xf32>
      %c0_12 = arith.constant 0 : index
      %c0_13 = arith.constant 0 : index
      %14 = vector.load %arg4[%c0_12, %c0_13] : memref<128x1xf32, #tpu.memory_space<vmem>>, vector<128x1xf32>
      %15 = vector.broadcast %14 : vector<128x1xf32> to vector<128x128xf32>
      %16 = arith.mulf %13, %15 : vector<128x128xf32>
      %c0_14 = arith.constant 0 : index
      %c0_15 = arith.constant 0 : index
      %17 = vector.load %arg5[%c0_14, %c0_15] : memref<1x128xf32, #tpu.memory_space<vmem>>, vector<1x128xf32>
      %18 = vector.broadcast %17 : vector<1x128xf32> to vector<128x128xf32>
      %19 = arith.addf %16, %18 : vector<128x128xf32>
      %c0_16 = arith.constant 0 : index
      %c0_17 = arith.constant 0 : index
      %20 = vector.load %arg6[%c0_16, %c0_17] : memref<128x128xf32, #tpu.memory_space<vmem>>, vector<128x128xf32>
      tpu.vector_store %arg6[%c0_16, %c0_17], %19 {strides = array<i32>} : memref<128x128xf32, #tpu.memory_space<vmem>>, vector<128x128xf32>,
    } else {
    }
    return
  }
  func.func @transform_0(%arg0: i32, %arg1: i32) -> (i32, i32) {
    %c0_i32 = arith.constant 0 : i32
    return %arg0, %arg1 : i32, i32
  }
  func.func @transform_1(%arg0: i32, %arg1: i32) -> (i32, i32) {
    %c0_i32 = arith.constant 0 : i32
    %c0_i32_0 = arith.constant 0 : i32
    return %arg1, %c0_i32 : i32, i32
  }
  func.func @transform_2(%arg0: i32, %arg1: i32) -> (i32, i32) {
    %c0_i32 = arith.constant 0 : i32
    %c0_i32_0 = arith.constant 0 : i32
    return %arg0, %c0_i32 : i32, i32
  }
  func.func @transform_3(%arg0: i32, %arg1: i32) -> (i32, i32) {
    %c0_i32 = arith.constant 0 : i32
    %c0_i32_0 = arith.constant 0 : i32
    %c0_i32_1 = arith.constant 0 : i32
    return %c0_i32, %c0_i32_0 : i32, i32
  }
  func.func @transform_4(%arg0: i32, %arg1: i32) -> (i32, i32) {
    %c0_i32 = arith.constant 0 : i32
    %c0_i32_0 = arith.constant 0 : i32
    return %arg0, %c0_i32 : i32, i32
  }
}

module attributes {stable_mosaic.version = 11 : i64} {
  func.func @gcn_layer1_kernel(%arg0: i32, %arg1: i32, %arg2: memref<128x128xi8, #tpu.memory_space<vmem>>, %arg3: memref<128x128xbf16, #tpu.memory_space<vmem>>, %arg4: memref<128x1xf32, #tpu.memory_space<vmem>>, %arg5: memref<1x128xf32, #tpu.memory_space<vmem>>, %arg6: memref<128x128xf32, #tpu.memory_space<vmem>>, %arg7: memref<128x128xbf16, #tpu.memory_space<vmem>>, %arg8: memref<128x128xf32, #tpu.memory_space<vmem>>) attributes {dimension_semantics = [#tpu.dimension_semantics<parallel>, #tpu.dimension_semantics<arbitrary>], iteration_bounds = array<i64: 1, 1>, scalar_prefetch = 0 : i64, scratch_operands = 1 : i64, tpu.core_type = #tpu.core_type<tc>, window_params = [{pipeline_mode = #tpu.pipeline_mode<double_buffered>, transform_indices = @transform_0, window_bounds = array<i64: 128, 128>}, {transform_indices = @transform_1, window_bounds = array<i64: 128, 128>}, {transform_indices = @transform_2, window_bounds = array<i64: 128, 1>}, {pipeline_mode = #tpu.pipeline_mode<synchronous>, transform_indices = @transform_3, window_bounds = array<i64: 1, 128>}, {pipeline_mode = #tpu.pipeline_mode<synchronous>, transform_indices = @transform_4, window_bounds = array<i64: 128, 128>}, {transform_indices = @transform_5, window_bounds = array<i64: 128, 128>}]} {
    %c0_i32 = arith.constant 0 : i32
    %0 = arith.cmpi eq, %arg1, %c0_i32 : i32
    %1 = arith.extui %0 : i1 to i32
    %c0_i32_0 = arith.constant 0 : i32
    %2 = arith.cmpi ne, %1, %c0_i32_0 : i32
    scf.if %2 {
      %cst_10 = arith.constant 0.000000e+00 : f32
      %13 = vector.broadcast %cst_10 : f32 to vector<128x128xf32>
      %c0_11 = arith.constant 0 : index
      %c0_12 = arith.constant 0 : index
      %14 = vector.load %arg8[%c0_11, %c0_12] : memref<128x128xf32, #tpu.memory_space<vmem>>, vector<128x128xf32>
      tpu.vector_store %arg8[%c0_11, %c0_12], %13 {strides = array<i32>} : memref<128x128xf32, #tpu.memory_space<vmem>>, vector<128x128xf32>,
    } else {
    }
    %c0 = arith.constant 0 : index
    %c0_1 = arith.constant 0 : index
    %3 = vector.load %arg8[%c0, %c0_1] : memref<128x128xf32, #tpu.memory_space<vmem>>, vector<128x128xf32>
    %c0_2 = arith.constant 0 : index
    %c0_3 = arith.constant 0 : index
    %4 = vector.load %arg2[%c0_2, %c0_3] : memref<128x128xi8, #tpu.memory_space<vmem>>, vector<128x128xi8>
    %5 = arith.sitofp %4 : vector<128x128xi8> to vector<128x128xbf16>
    %c0_4 = arith.constant 0 : index
    %c0_5 = arith.constant 0 : index
    %6 = vector.load %arg3[%c0_4, %c0_5] : memref<128x128xbf16, #tpu.memory_space<vmem>>, vector<128x128xbf16>
    %cst = arith.constant dense<0.000000e+00> : vector<128x128xf32>
    %7 = tpu.matmul %5, %6, %cst {dimension_numbers = #tpu.dot_dimension_numbers<[1], [0], [0], [1], [0, 0, 1, 1], [], []>} : vector<128x128xbf16>, vector<128x128xbf16>, vector<128x128xf32> -> vector<128x128xf32>
    %8 = arith.addf %3, %7 : vector<128x128xf32>
    %c0_6 = arith.constant 0 : index
    %c0_7 = arith.constant 0 : index
    %9 = vector.load %arg8[%c0_6, %c0_7] : memref<128x128xf32, #tpu.memory_space<vmem>>, vector<128x128xf32>
    tpu.vector_store %arg8[%c0_6, %c0_7], %8 {strides = array<i32>} : memref<128x128xf32, #tpu.memory_space<vmem>>, vector<128x128xf32>,
    %c0_i32_8 = arith.constant 0 : i32
    %10 = arith.cmpi eq, %arg1, %c0_i32_8 : i32
    %11 = arith.extui %10 : i1 to i32
    %c0_i32_9 = arith.constant 0 : i32
    %12 = arith.cmpi ne, %11, %c0_i32_9 : i32
    scf.if %12 {
      %c0_10 = arith.constant 0 : index
      %c0_11 = arith.constant 0 : index
      %13 = vector.load %arg8[%c0_10, %c0_11] : memref<128x128xf32, #tpu.memory_space<vmem>>, vector<128x128xf32>
      %c0_12 = arith.constant 0 : index
      %c0_13 = arith.constant 0 : index
      %14 = vector.load %arg4[%c0_12, %c0_13] : memref<128x1xf32, #tpu.memory_space<vmem>>, vector<128x1xf32>
      %15 = vector.broadcast %14 : vector<128x1xf32> to vector<128x128xf32>
      %16 = arith.mulf %13, %15 : vector<128x128xf32>
      %c0_14 = arith.constant 0 : index
      %c0_15 = arith.constant 0 : index
      %17 = vector.load %arg5[%c0_14, %c0_15] : memref<1x128xf32, #tpu.memory_space<vmem>>, vector<1x128xf32>
      %18 = vector.broadcast %17 : vector<1x128xf32> to vector<128x128xf32>
      %19 = arith.addf %16, %18 : vector<128x128xf32>
      %cst_16 = arith.constant 0.000000e+00 : f32
      %20 = vector.broadcast %cst_16 : f32 to vector<128x128xf32>
      %21 = arith.maximumf %19, %20 : vector<128x128xf32>
      %c0_17 = arith.constant 0 : index
      %c0_18 = arith.constant 0 : index
      %22 = vector.load %arg6[%c0_17, %c0_18] : memref<128x128xf32, #tpu.memory_space<vmem>>, vector<128x128xf32>
      %cst_19 = arith.constant dense<0.000000e+00> : vector<128x128xf32>
      %23 = tpu.matmul %21, %22, %cst_19 {dimension_numbers = #tpu.dot_dimension_numbers<[1], [0], [0], [1], [0, 0, 1, 1], [], []>} : vector<128x128xf32>, vector<128x128xf32>, vector<128x128xf32> -> vector<128x128xf32>
      %24 = arith.truncf %23 : vector<128x128xf32> to vector<128x128xbf16>
      %c0_20 = arith.constant 0 : index
      %c0_21 = arith.constant 0 : index
      %25 = vector.load %arg7[%c0_20, %c0_21] : memref<128x128xbf16, #tpu.memory_space<vmem>>, vector<128x128xbf16>
      tpu.vector_store %arg7[%c0_20, %c0_21], %24 {strides = array<i32>} : memref<128x128xbf16, #tpu.memory_space<vmem>>, vector<128x128xbf16>,
    } else {
    }
    return
  }
  func.func @transform_0(%arg0: i32, %arg1: i32) -> (i32, i32) {
    %c0_i32 = arith.constant 0 : i32
    return %arg0, %arg1 : i32, i32
  }
  func.func @transform_1(%arg0: i32, %arg1: i32) -> (i32, i32) {
    %c0_i32 = arith.constant 0 : i32
    %c0_i32_0 = arith.constant 0 : i32
    return %arg1, %c0_i32 : i32, i32
  }
  func.func @transform_2(%arg0: i32, %arg1: i32) -> (i32, i32) {
    %c0_i32 = arith.constant 0 : i32
    %c0_i32_0 = arith.constant 0 : i32
    return %arg0, %c0_i32 : i32, i32
  }
  func.func @transform_3(%arg0: i32, %arg1: i32) -> (i32, i32) {
    %c0_i32 = arith.constant 0 : i32
    %c0_i32_0 = arith.constant 0 : i32
    %c0_i32_1 = arith.constant 0 : i32
    return %c0_i32, %c0_i32_0 : i32, i32
  }
  func.func @transform_4(%arg0: i32, %arg1: i32) -> (i32, i32) {
    %c0_i32 = arith.constant 0 : i32
    %c0_i32_0 = arith.constant 0 : i32
    %c0_i32_1 = arith.constant 0 : i32
    return %c0_i32, %c0_i32_0 : i32, i32
  }
  func.func @transform_5(%arg0: i32, %arg1: i32) -> (i32, i32) {
    %c0_i32 = arith.constant 0 : i32
    %c0_i32_0 = arith.constant 0 : i32
    return %arg0, %c0_i32 : i32, i32
  }
}

</mosaic_0001>

<llo_original>
// kernel: synaptic_gnn.2
$region0: #{synaptic_gnn.2}
  #allocation0 [shape = 'u32[]', space=smem, size = 0x4, offset = 0x4, fixed_abs, tag = 'smem constant byte address 0x4 - core index']
  #allocation1 [shape = 'u32[144,128]{1,0:T(1,128)}', space=vmem, size = 0x12000, scoped, tag = 'internal scratch']
  #allocation2 [shape = 'f32[128,128]{1,0:T(8,128)}', space=vmem, size = 0x10000, scoped, tag = 'scratch operand']
  %s0 = inlined_call_operand.vmem [shape: s8[128,128], index: 0, kind: input, shape index: {}]
  %s1 = inlined_call_operand.vmem [shape: bf16[128,128], index: 1, kind: input, shape index: {}]
  %s2 = inlined_call_operand.vmem [shape: f32[128,1], index: 2, kind: input, shape index: {}]
  %s3 = inlined_call_operand.vmem [shape: f32[1,128], index: 3, kind: input, shape index: {}]
  %s4 = inlined_call_operand.vmem [shape: f32[128,128], index: 4, kind: input, shape index: {}]
  %s5 = inlined_call_operand.vmem [shape: bf16[128,128], index: 5, kind: output, shape index: {}]
  %s6 = sld [smem:[#allocation0]]
  $region38: #{synaptic_gnn.2} parent=0
    _
  %s8 = ssub.s32 1, %s6
  %s9 = scalar_select 0, %s8, %s6
  // Predicated region
  $region2: #{synaptic_gnn.2} parent=0 // pred_check
    _
  $region3: #{synaptic_gnn.2} parent=0 // pred_check_branch
    %11 = sbr.rel (0) target = $region5
  $region4: #{synaptic_gnn.2} parent=0 // pred_region
    _
  $region5: #{synaptic_gnn.2} parent=0 // pred_fallthru
    _
  // Predicated region
  $region6: #{synaptic_gnn.2} parent=0 // pred_check
    _
  $region7: #{synaptic_gnn.2} parent=0 // pred_check_branch
    %13 = sbr.rel (0) target = $region9
  $region8: #{synaptic_gnn.2} parent=0 // pred_region
    _
  $region9: #{synaptic_gnn.2} parent=0 // pred_fallthru
    _
  // Predicated region
  $region10: #{synaptic_gnn.2} parent=0 // pred_check
    _
  $region11: #{synaptic_gnn.2} parent=0 // pred_check_branch
    %15 = sbr.rel (0) target = $region13
  $region12: #{synaptic_gnn.2} parent=0 // pred_region
    _
  $region13: #{synaptic_gnn.2} parent=0 // pred_fallthru
    _
  // Predicated region
  $region14: #{synaptic_gnn.2} parent=0 // pred_check
    _
  $region15: #{synaptic_gnn.2} parent=0 // pred_check_branch
    %17 = sbr.rel (0) target = $region17
  $region16: #{synaptic_gnn.2} parent=0 // pred_region
    _
  $region17: #{synaptic_gnn.2} parent=0 // pred_fallthru
    _
  // Predicated region
  $region18: #{synaptic_gnn.2} parent=0 // pred_check
    _
  $region19: #{synaptic_gnn.2} parent=0 // pred_check_branch
    %19 = sbr.rel (0) target = $region21
  $region20: #{synaptic_gnn.2} parent=0 // pred_region
    _
  $region21: #{synaptic_gnn.2} parent=0 // pred_fallthru
    _
  %p21 = scmp.eq.s32.totalorder 0, 0
  // Predicated region
  $region22: #{synaptic_gnn.2} parent=0 // pred_check
    %p22 = pneg %p21
  $region23: #{synaptic_gnn.2} parent=0 // pred_check_branch
    %24 = sbr.rel (%p22) target = $region25
  $region24: #{synaptic_gnn.2} parent=0 // pred_region
    %25 = vst [vmem:[#allocation2] sm:$0xff] 0.0
    %26 = vst [vmem:[#allocation2 + $0x8] sm:$0xff] 0.0
    %27 = vst [vmem:[#allocation2 + $0x10] sm:$0xff] 0.0
    %28 = vst [vmem:[#allocation2 + $0x18] sm:$0xff] 0.0
    %29 = vst [vmem:[#allocation2 + $0x20] sm:$0xff] 0.0
    %30 = vst [vmem:[#allocation2 + $0x28] sm:$0xff] 0.0
    %31 = vst [vmem:[#allocation2 + $0x30] sm:$0xff] 0.0
    %32 = vst [vmem:[#allocation2 + $0x38] sm:$0xff] 0.0
    %33 = vst [vmem:[#allocation2 + $0x40] sm:$0xff] 0.0
    %34 = vst [vmem:[#allocation2 + $0x48] sm:$0xff] 0.0
    %35 = vst [vmem:[#allocation2 + $0x50] sm:$0xff] 0.0
    %36 = vst [vmem:[#allocation2 + $0x58] sm:$0xff] 0.0
    %37 = vst [vmem:[#allocation2 + $0x60] sm:$0xff] 0.0
    %38 = vst [vmem:[#allocation2 + $0x68] sm:$0xff] 0.0
    %39 = vst [vmem:[#allocation2 + $0x70] sm:$0xff] 0.0
    %40 = vst [vmem:[#allocation2 + $0x78] sm:$0xff] 0.0
  $region25: #{synaptic_gnn.2} parent=0 // pred_fallthru
    _
  %v41 = vld [vmem:[#allocation2] sm:$0xff]
  %v42 = vld [vmem:[#allocation2 + $0x8] sm:$0xff]
  %v43 = vld [vmem:[#allocation2 + $0x10] sm:$0xff]
  %v44 = vld [vmem:[#allocation2 + $0x18] sm:$0xff]
  %v45 = vld [vmem:[#allocation2 + $0x20] sm:$0xff]
  %v46 = vld [vmem:[#allocation2 + $0x28] sm:$0xff]
  %v47 = vld [vmem:[#allocation2 + $0x30] sm:$0xff]
  %v48 = vld [vmem:[#allocation2 + $0x38] sm:$0xff]
  %v49 = vld [vmem:[#allocation2 + $0x40] sm:$0xff]
  %v50 = vld [vmem:[#allocation2 + $0x48] sm:$0xff]
  %v51 = vld [vmem:[#allocation2 + $0x50] sm:$0xff]
  %v52 = vld [vmem:[#allocation2 + $0x58] sm:$0xff]
  %v53 = vld [vmem:[#allocation2 + $0x60] sm:$0xff]
  %v54 = vld [vmem:[#allocation2 + $0x68] sm:$0xff]
  %v55 = vld [vmem:[#allocation2 + $0x70] sm:$0xff]
  %v56 = vld [vmem:[#allocation2 + $0x78] sm:$0xff]
  %v57 = vld [vmem:[%s0] sm:$0xff]
  %v58 = vld [vmem:[%s0 + $0x8] sm:$0xff]
  %v59 = vld [vmem:[%s0 + $0x10] sm:$0xff]
  %v60 = vld [vmem:[%s0 + $0x18] sm:$0xff]
  %v61 = vunpack.c.l.s8.bf16 %v57
  %v62 = vunpack.c.h.s8.bf16 %v57
  %v63 = vunpack.c.l.s8.bf16 %v58
  %v64 = vunpack.c.h.s8.bf16 %v58
  %v65 = vunpack.c.l.s8.bf16 %v59
  %v66 = vunpack.c.h.s8.bf16 %v59
  %v67 = vunpack.c.l.s8.bf16 %v60
  %v68 = vunpack.c.h.s8.bf16 %v60
  %v69 = vld [vmem:[%s1] sm:$0xf]
  %v70 = vld [vmem:[%s1 + $0x4] sm:$0xf]
  %v71 = vld [vmem:[%s1 + $0x8] sm:$0xf]
  %v72 = vld [vmem:[%s1 + $0xc] sm:$0xf]
  %v73 = vld [vmem:[%s1 + $0x10] sm:$0xf]
  %v74 = vld [vmem:[%s1 + $0x14] sm:$0xf]
  %v75 = vld [vmem:[%s1 + $0x18] sm:$0xf]
  %v76 = vld [vmem:[%s1 + $0x1c] sm:$0xf]
  %v77 = vld [vmem:[%s1 + $0x20] sm:$0xf]
  %v78 = vld [vmem:[%s1 + $0x24] sm:$0xf]
  %v79 = vld [vmem:[%s1 + $0x28] sm:$0xf]
  %v80 = vld [vmem:[%s1 + $0x2c] sm:$0xf]
  %v81 = vld [vmem:[%s1 + $0x30] sm:$0xf]
  %v82 = vld [vmem:[%s1 + $0x34] sm:$0xf]
  %v83 = vld [vmem:[%s1 + $0x38] sm:$0xf]
  %v84 = vld [vmem:[%s1 + $0x3c] sm:$0xf]
  %v101 = vunpack.c.l.b16 %v69
  %v102 = vunpack.c.l.b16 %v70
  %v103 = vunpack.c.l.b16 %v71
  %v104 = vunpack.c.l.b16 %v72
  %v105 = vunpack.c.l.b16 %v73
  %v106 = vunpack.c.l.b16 %v74
  %v107 = vunpack.c.l.b16 %v75
  %v108 = vunpack.c.l.b16 %v76
  %v109 = vunpack.c.l.b16 %v77
  %v110 = vunpack.c.l.b16 %v78
  %v111 = vunpack.c.l.b16 %v79
  %v112 = vunpack.c.l.b16 %v80
  %v113 = vunpack.c.l.b16 %v81
  %v114 = vunpack.c.l.b16 %v82
  %v115 = vunpack.c.l.b16 %v83
  %v116 = vunpack.c.l.b16 %v84
  %v117 = vpack.c.b16 %v102, %v101
  %v118 = vpack.c.b16 %v104, %v103
  %v119 = vpack.c.b16 %v106, %v105
  %v120 = vpack.c.b16 %v108, %v107
  %v121 = vpack.c.b16 %v110, %v109
  %v122 = vpack.c.b16 %v112, %v111
  %v123 = vpack.c.b16 %v114, %v113
  %v124 = vpack.c.b16 %v116, %v115
  %133 = vmatprep.subr.bf16.mxu0 0
  %134 = vmatpush1.bf16.msra.mxu0 %v124
  %135 = vmatprep.subr.bf16.mxu0 0
  %136 = vmatpush1.bf16.msra.mxu0 %v123
  %137 = vmatprep.subr.bf16.mxu0 0
  %138 = vmatpush1.bf16.msra.mxu0 %v122
  %139 = vmatprep.subr.bf16.mxu0 0
  %140 = vmatpush1.bf16.msra.mxu0 %v121
  %141 = vmatprep.subr.bf16.mxu0 0
  %142 = vmatpush1.bf16.msra.mxu0 %v120
  %143 = vmatprep.subr.bf16.mxu0 0
  %144 = vmatpush1.bf16.msra.mxu0 %v119
  %145 = vmatprep.subr.bf16.mxu0 0
  %146 = vmatpush1.bf16.msra.mxu0 %v118
  %147 = vmatprep.subr.bf16.mxu0 0
  %148 = vmatpush1.bf16.msra.mxu0 %v117
  %149 = vmatprep.subr.bf16.mxu0 0
  %150 = vmatpush2.bf16.msra.mxu0 0
  %151 = vmatprep.subr.bf16.mxu0 0
  %152 = vmatpush2.bf16.msra.mxu0 0
  %153 = vmatprep.subr.bf16.mxu0 0
  %154 = vmatpush2.bf16.msra.mxu0 0
  %155 = vmatprep.subr.bf16.mxu0 0
  %156 = vmatpush2.bf16.msra.mxu0 0
  %157 = vmatprep.subr.bf16.mxu0 0
  %158 = vmatpush2.bf16.msra.mxu0 0
  %159 = vmatprep.subr.bf16.mxu0 0
  %160 = vmatpush2.bf16.msra.mxu0 0
  %161 = vmatprep.subr.bf16.mxu0 0
  %162 = vmatpush2.bf16.msra.mxu0 0
  %163 = vmatprep.subr.bf16.mxu0 0
  %164 = vmatpush2.bf16.msra.mxu0 0
  %165 = vmatprep.mubr.bf16.mxu0 0
  %166 = vmatmul.mubr.bf16.gmra.mxu0 %v61
  %v167 = vpop.f32.mrf.mxu0
  %v168 = vadd.f32 0.0, %v167
  %v169 = vpop.f32.mrf.mxu0
  %v170 = vpop.f32.mrf.mxu0
  %v171 = vadd.f32 0.0, %v170
  %v172 = vpop.f32.mrf.mxu0
  %173 = vmatprep.mubr.bf16.mxu0 0
  %174 = vmatmul.mubr.bf16.gmra.mxu0 %v62
  %v175 = vpop.f32.mrf.mxu0
  %v176 = vadd.f32 0.0, %v175
  %v177 = vpop.f32.mrf.mxu0
  %v178 = vpop.f32.mrf.mxu0
  %v179 = vadd.f32 0.0, %v178
  %v180 = vpop.f32.mrf.mxu0
  %181 = vmatprep.mubr.bf16.mxu0 0
  %182 = vmatmul.mubr.bf16.gmra.mxu0 %v63
  %v183 = vpop.f32.mrf.mxu0
  %v184 = vadd.f32 0.0, %v183
  %v185 = vpop.f32.mrf.mxu0
  %v186 = vpop.f32.mrf.mxu0
  %v187 = vadd.f32 0.0, %v186
  %v188 = vpop.f32.mrf.mxu0
  %189 = vmatprep.mubr.bf16.mxu0 0
  %190 = vmatmul.mubr.bf16.gmra.mxu0 %v64
  %v191 = vpop.f32.mrf.mxu0
  %v192 = vadd.f32 0.0, %v191
  %v193 = vpop.f32.mrf.mxu0
  %v194 = vpop.f32.mrf.mxu0
  %v195 = vadd.f32 0.0, %v194
  %v196 = vpop.f32.mrf.mxu0
  %197 = vmatprep.mubr.bf16.mxu0 0
  %198 = vmatmul.mubr.bf16.gmra.mxu0 %v65
  %v199 = vpop.f32.mrf.mxu0
  %v200 = vadd.f32 0.0, %v199
  %v201 = vpop.f32.mrf.mxu0
  %v202 = vpop.f32.mrf.mxu0
  %v203 = vadd.f32 0.0, %v202
  %v204 = vpop.f32.mrf.mxu0
  %205 = vmatprep.mubr.bf16.mxu0 0
  %206 = vmatmul.mubr.bf16.gmra.mxu0 %v66
  %v207 = vpop.f32.mrf.mxu0
  %v208 = vadd.f32 0.0, %v207
  %v209 = vpop.f32.mrf.mxu0
  %v210 = vpop.f32.mrf.mxu0
  %v211 = vadd.f32 0.0, %v210
  %v212 = vpop.f32.mrf.mxu0
  %213 = vmatprep.mubr.bf16.mxu0 0
  %214 = vmatmul.mubr.bf16.gmra.mxu0 %v67
  %v215 = vpop.f32.mrf.mxu0
  %v216 = vadd.f32 0.0, %v215
  %v217 = vpop.f32.mrf.mxu0
  %v218 = vpop.f32.mrf.mxu0
  %v219 = vadd.f32 0.0, %v218
  %v220 = vpop.f32.mrf.mxu0
  %221 = vmatprep.mubr.bf16.mxu0 0
  %222 = vmatmul.mubr.bf16.gmra.mxu0 %v68
  %v223 = vpop.f32.mrf.mxu0
  %v224 = vadd.f32 0.0, %v223
  %v225 = vpop.f32.mrf.mxu0
  %v226 = vpop.f32.mrf.mxu0
  %v227 = vadd.f32 0.0, %v226
  %v228 = vpop.f32.mrf.mxu0
  %229 = vdwg.mxu0
  %v230 = vadd.f32 %v41, %v168
  %v231 = vadd.f32 %v42, %v171
  %v232 = vadd.f32 %v43, %v176
  %v233 = vadd.f32 %v44, %v179
  %v234 = vadd.f32 %v45, %v184
  %v235 = vadd.f32 %v46, %v187
  %v236 = vadd.f32 %v47, %v192
  %v237 = vadd.f32 %v48, %v195
  %v238 = vadd.f32 %v49, %v200
  %v239 = vadd.f32 %v50, %v203
  %v240 = vadd.f32 %v51, %v208
  %v241 = vadd.f32 %v52, %v211
  %v242 = vadd.f32 %v53, %v216
  %v243 = vadd.f32 %v54, %v219
  %v244 = vadd.f32 %v55, %v224
  %v245 = vadd.f32 %v56, %v227
  %246 = vst [vmem:[#allocation2] sm:$0xff] %v230
  %247 = vst [vmem:[#allocation2 + $0x8] sm:$0xff] %v231
  %248 = vst [vmem:[#allocation2 + $0x10] sm:$0xff] %v232
  %249 = vst [vmem:[#allocation2 + $0x18] sm:$0xff] %v233
  %250 = vst [vmem:[#allocation2 + $0x20] sm:$0xff] %v234
  %251 = vst [vmem:[#allocation2 + $0x28] sm:$0xff] %v235
  %252 = vst [vmem:[#allocation2 + $0x30] sm:$0xff] %v236
  %253 = vst [vmem:[#allocation2 + $0x38] sm:$0xff] %v237
  %254 = vst [vmem:[#allocation2 + $0x40] sm:$0xff] %v238
  %255 = vst [vmem:[#allocation2 + $0x48] sm:$0xff] %v239
  %256 = vst [vmem:[#allocation2 + $0x50] sm:$0xff] %v240
  %257 = vst [vmem:[#allocation2 + $0x58] sm:$0xff] %v241
  %258 = vst [vmem:[#allocation2 + $0x60] sm:$0xff] %v242
  %259 = vst [vmem:[#allocation2 + $0x68] sm:$0xff] %v243
  %260 = vst [vmem:[#allocation2 + $0x70] sm:$0xff] %v244
  %261 = vst [vmem:[#allocation2 + $0x78] sm:$0xff] %v245
  // Predicated region
  $region26: #{synaptic_gnn.2} parent=0 // pred_check
    %p262 = pneg %p21
  $region27: #{synaptic_gnn.2} parent=0 // pred_check_branch
    %264 = sbr.rel (%p262) target = $region29
  $region28: #{synaptic_gnn.2} parent=0 // pred_region
    %v265 = vld [vmem:[#allocation2] sm:$0xff]
    %v266 = vld [vmem:[#allocation2 + $0x8] sm:$0xff]
    %v267 = vld [vmem:[#allocation2 + $0x10] sm:$0xff]
    %v268 = vld [vmem:[#allocation2 + $0x18] sm:$0xff]
    %v269 = vld [vmem:[#allocation2 + $0x20] sm:$0xff]
    %v270 = vld [vmem:[#allocation2 + $0x28] sm:$0xff]
    %v271 = vld [vmem:[#allocation2 + $0x30] sm:$0xff]
    %v272 = vld [vmem:[#allocation2 + $0x38] sm:$0xff]
    %v273 = vld [vmem:[#allocation2 + $0x40] sm:$0xff]
    %v274 = vld [vmem:[#allocation2 + $0x48] sm:$0xff]
    %v275 = vld [vmem:[#allocation2 + $0x50] sm:$0xff]
    %v276 = vld [vmem:[#allocation2 + $0x58] sm:$0xff]
    %v277 = vld [vmem:[#allocation2 + $0x60] sm:$0xff]
    %v278 = vld [vmem:[#allocation2 + $0x68] sm:$0xff]
    %v279 = vld [vmem:[#allocation2 + $0x70] sm:$0xff]
    %v280 = vld [vmem:[#allocation2 + $0x78] sm:$0xff]
    %v281 = vld [vmem:[%s2] sm:$0xff]
    %v282 = vld [vmem:[%s2 + $0x8] sm:$0xff]
    %v283 = vld [vmem:[%s2 + $0x10] sm:$0xff]
    %v284 = vld [vmem:[%s2 + $0x18] sm:$0xff]
    %v285 = vld [vmem:[%s2 + $0x20] sm:$0xff]
    %v286 = vld [vmem:[%s2 + $0x28] sm:$0xff]
    %v287 = vld [vmem:[%s2 + $0x30] sm:$0xff]
    %v288 = vld [vmem:[%s2 + $0x38] sm:$0xff]
    %v289 = vld [vmem:[%s2 + $0x40] sm:$0xff]
    %v290 = vld [vmem:[%s2 + $0x48] sm:$0xff]
    %v291 = vld [vmem:[%s2 + $0x50] sm:$0xff]
    %v292 = vld [vmem:[%s2 + $0x58] sm:$0xff]
    %v293 = vld [vmem:[%s2 + $0x60] sm:$0xff]
    %v294 = vld [vmem:[%s2 + $0x68] sm:$0xff]
    %v295 = vld [vmem:[%s2 + $0x70] sm:$0xff]
    %v296 = vld [vmem:[%s2 + $0x78] sm:$0xff]
    %298 = vset.pattern.permute.xlu0 0
    %299 = vperm.xlu0 %298, %v281
    %v300 = vpop.permute.xlu0 %299
    %303 = vset.pattern.permute.xlu0 0
    %304 = vperm.xlu0 %303, %v282
    %v305 = vpop.permute.xlu0 %304
    %308 = vset.pattern.permute.xlu0 0
    %309 = vperm.xlu0 %308, %v283
    %v310 = vpop.permute.xlu0 %309
    %313 = vset.pattern.permute.xlu0 0
    %314 = vperm.xlu0 %313, %v284
    %v315 = vpop.permute.xlu0 %314
    %318 = vset.pattern.permute.xlu0 0
    %319 = vperm.xlu0 %318, %v285
    %v320 = vpop.permute.xlu0 %319
    %323 = vset.pattern.permute.xlu0 0
    %324 = vperm.xlu0 %323, %v286
    %v325 = vpop.permute.xlu0 %324
    %328 = vset.pattern.permute.xlu0 0
    %329 = vperm.xlu0 %328, %v287
    %v330 = vpop.permute.xlu0 %329
    %333 = vset.pattern.permute.xlu0 0
    %334 = vperm.xlu0 %333, %v288
    %v335 = vpop.permute.xlu0 %334
    %338 = vset.pattern.permute.xlu0 0
    %339 = vperm.xlu0 %338, %v289
    %v340 = vpop.permute.xlu0 %339
    %343 = vset.pattern.permute.xlu0 0
    %344 = vperm.xlu0 %343, %v290
    %v345 = vpop.permute.xlu0 %344
    %348 = vset.pattern.permute.xlu0 0
    %349 = vperm.xlu0 %348, %v291
    %v350 = vpop.permute.xlu0 %349
    %353 = vset.pattern.permute.xlu0 0
    %354 = vperm.xlu0 %353, %v292
    %v355 = vpop.permute.xlu0 %354
    %358 = vset.pattern.permute.xlu0 0
    %359 = vperm.xlu0 %358, %v293
    %v360 = vpop.permute.xlu0 %359
    %363 = vset.pattern.permute.xlu0 0
    %364 = vperm.xlu0 %363, %v294
    %v365 = vpop.permute.xlu0 %364
    %368 = vset.pattern.permute.xlu0 0
    %369 = vperm.xlu0 %368, %v295
    %v370 = vpop.permute.xlu0 %369
    %373 = vset.pattern.permute.xlu0 0
    %374 = vperm.xlu0 %373, %v296
    %v375 = vpop.permute.xlu0 %374
    %v377 = vmul.f32 %v265, %v300
    %v378 = vmul.f32 %v266, %v305
    %v379 = vmul.f32 %v267, %v310
    %v380 = vmul.f32 %v268, %v315
    %v381 = vmul.f32 %v269, %v320
    %v382 = vmul.f32 %v270, %v325
    %v383 = vmul.f32 %v271, %v330
    %v384 = vmul.f32 %v272, %v335
    %v385 = vmul.f32 %v273, %v340
    %v386 = vmul.f32 %v274, %v345
    %v387 = vmul.f32 %v275, %v350
    %v388 = vmul.f32 %v276, %v355
    %v389 = vmul.f32 %v277, %v360
    %v390 = vmul.f32 %v278, %v365
    %v391 = vmul.f32 %v279, %v370
    %v392 = vmul.f32 %v280, %v375
    %v393 = vld [vmem:[%s3] sm:$0x1]
    %v395 = vlaneseq
    %v396 = vshrl.u32 %v395, 7
    %v397 = vsub.s32 0, %v396
    %v398 = vrot.slane %v393, %v397
    %v400 = vadd.f32 %v377, %v398
    %v401 = vadd.f32 %v378, %v398
    %v402 = vadd.f32 %v379, %v398
    %v403 = vadd.f32 %v380, %v398
    %v404 = vadd.f32 %v381, %v398
    %v405 = vadd.f32 %v382, %v398
    %v406 = vadd.f32 %v383, %v398
    %v407 = vadd.f32 %v384, %v398
    %v408 = vadd.f32 %v385, %v398
    %v409 = vadd.f32 %v386, %v398
    %v410 = vadd.f32 %v387, %v398
    %v411 = vadd.f32 %v388, %v398
    %v412 = vadd.f32 %v389, %v398
    %v413 = vadd.f32 %v390, %v398
    %v414 = vadd.f32 %v391, %v398
    %v415 = vadd.f32 %v392, %v398
    %v416 = vmax.f32 %v400, 0.0
    %v417 = vmax.f32 %v401, 0.0
    %v418 = vmax.f32 %v402, 0.0
    %v419 = vmax.f32 %v403, 0.0
    %v420 = vmax.f32 %v404, 0.0
    %v421 = vmax.f32 %v405, 0.0
    %v422 = vmax.f32 %v406, 0.0
    %v423 = vmax.f32 %v407, 0.0
    %v424 = vmax.f32 %v408, 0.0
    %v425 = vmax.f32 %v409, 0.0
    %v426 = vmax.f32 %v410, 0.0
    %v427 = vmax.f32 %v411, 0.0
    %v428 = vmax.f32 %v412, 0.0
    %v429 = vmax.f32 %v413, 0.0
    %v430 = vmax.f32 %v414, 0.0
    %v431 = vmax.f32 %v415, 0.0
    %v432 = vld [vmem:[%s4] sm:$0xff]
    %v433 = vld [vmem:[%s4 + $0x8] sm:$0xff]
    %v434 = vld [vmem:[%s4 + $0x10] sm:$0xff]
    %v435 = vld [vmem:[%s4 + $0x18] sm:$0xff]
    %v436 = vld [vmem:[%s4 + $0x20] sm:$0xff]
    %v437 = vld [vmem:[%s4 + $0x28] sm:$0xff]
    %v438 = vld [vmem:[%s4 + $0x30] sm:$0xff]
    %v439 = vld [vmem:[%s4 + $0x38] sm:$0xff]
    %v440 = vld [vmem:[%s4 + $0x40] sm:$0xff]
    %v441 = vld [vmem:[%s4 + $0x48] sm:$0xff]
    %v442 = vld [vmem:[%s4 + $0x50] sm:$0xff]
    %v443 = vld [vmem:[%s4 + $0x58] sm:$0xff]
    %v444 = vld [vmem:[%s4 + $0x60] sm:$0xff]
    %v445 = vld [vmem:[%s4 + $0x68] sm:$0xff]
    %v446 = vld [vmem:[%s4 + $0x70] sm:$0xff]
    %v447 = vld [vmem:[%s4 + $0x78] sm:$0xff]
    %448 = vmatprep.subr.mxu0 0.0
    %449 = vmatpush1.msra.mxu0 %v447
    %450 = vmatprep.subr.mxu0 0.0
    %451 = vmatpush1.msra.mxu0 %v446
    %452 = vmatprep.subr.mxu0 0.0
    %453 = vmatpush1.msra.mxu0 %v445
    %454 = vmatprep.subr.mxu0 0.0
    %455 = vmatpush1.msra.mxu0 %v444
    %456 = vmatprep.subr.mxu0 0.0
    %457 = vmatpush1.msra.mxu0 %v443
    %458 = vmatprep.subr.mxu0 0.0
    %459 = vmatpush1.msra.mxu0 %v442
    %460 = vmatprep.subr.mxu0 0.0
    %461 = vmatpush1.msra.mxu0 %v441
    %462 = vmatprep.subr.mxu0 0.0
    %463 = vmatpush1.msra.mxu0 %v440
    %464 = vmatprep.subr.mxu0 0.0
    %465 = vmatpush1.msra.mxu0 %v439
    %466 = vmatprep.subr.mxu0 0.0
    %467 = vmatpush1.msra.mxu0 %v438
    %468 = vmatprep.subr.mxu0 0.0
    %469 = vmatpush1.msra.mxu0 %v437
    %470 = vmatprep.subr.mxu0 0.0
    %471 = vmatpush1.msra.mxu0 %v436
    %472 = vmatprep.subr.mxu0 0.0
    %473 = vmatpush1.msra.mxu0 %v435
    %474 = vmatprep.subr.mxu0 0.0
    %475 = vmatpush1.msra.mxu0 %v434
    %476 = vmatprep.subr.mxu0 0.0
    %477 = vmatpush1.msra.mxu0 %v433
    %478 = vmatprep.subr.mxu0 0.0
    %479 = vmatpush1.msra.mxu0 %v432
    %480 = vmatprep.subr.mxu0 0.0
    %481 = vmatpush2.msra.mxu0 0.0
    %482 = vmatprep.subr.mxu0 0.0
    %483 = vmatpush2.msra.mxu0 0.0
    %484 = vmatprep.subr.mxu0 0.0
    %485 = vmatpush2.msra.mxu0 0.0
    %486 = vmatprep.subr.mxu0 0.0
    %487 = vmatpush2.msra.mxu0 0.0
    %488 = vmatprep.subr.mxu0 0.0
    %489 = vmatpush2.msra.mxu0 0.0
    %490 = vmatprep.subr.mxu0 0.0
    %491 = vmatpush2.msra.mxu0 0.0
    %492 = vmatprep.subr.mxu0 0.0
    %493 = vmatpush2.msra.mxu0 0.0
    %494 = vmatprep.subr.mxu0 0.0
    %495 = vmatpush2.msra.mxu0 0.0
    %496 = vmatprep.subr.mxu0 0.0
    %497 = vmatpush2.msra.mxu0 0.0
    %498 = vmatprep.subr.mxu0 0.0
    %499 = vmatpush2.msra.mxu0 0.0
    %500 = vmatprep.subr.mxu0 0.0
    %501 = vmatpush2.msra.mxu0 0.0
    %502 = vmatprep.subr.mxu0 0.0
    %503 = vmatpush2.msra.mxu0 0.0
    %504 = vmatprep.subr.mxu0 0.0
    %505 = vmatpush2.msra.mxu0 0.0
    %506 = vmatprep.subr.mxu0 0.0
    %507 = vmatpush2.msra.mxu0 0.0
    %508 = vmatprep.subr.mxu0 0.0
    %509 = vmatpush2.msra.mxu0 0.0
    %510 = vmatprep.subr.mxu0 0.0
    %511 = vmatpush2.msra.mxu0 0.0
    %512 = vmatprep.mubr.f32.mxu0 0.0
    %513 = vmatmul.mubr.f32.gmra.mxu0 %v416
    %v514 = vpop.f32.mrf.mxu0
    %v515 = vadd.f32 0.0, %v514
    %v516 = vpop.f32.mrf.mxu0
    %517 = vmatprep.mubr.f32.mxu0 0.0
    %518 = vmatmul.mubr.f32.gmra.mxu0 %v417
    %v519 = vpop.f32.mrf.mxu0
    %v520 = vadd.f32 0.0, %v519
    %v521 = vpop.f32.mrf.mxu0
    %522 = vmatprep.mubr.f32.mxu0 0.0
    %523 = vmatmul.mubr.f32.gmra.mxu0 %v418
    %v524 = vpop.f32.mrf.mxu0
    %v525 = vadd.f32 0.0, %v524
    %v526 = vpop.f32.mrf.mxu0
    %527 = vmatprep.mubr.f32.mxu0 0.0
    %528 = vmatmul.mubr.f32.gmra.mxu0 %v419
    %v529 = vpop.f32.mrf.mxu0
    %v530 = vadd.f32 0.0, %v529
    %v531 = vpop.f32.mrf.mxu0
    %532 = vmatprep.mubr.f32.mxu0 0.0
    %533 = vmatmul.mubr.f32.gmra.mxu0 %v420
    %v534 = vpop.f32.mrf.mxu0
    %v535 = vadd.f32 0.0, %v534
    %v536 = vpop.f32.mrf.mxu0
    %537 = vmatprep.mubr.f32.mxu0 0.0
    %538 = vmatmul.mubr.f32.gmra.mxu0 %v421
    %v539 = vpop.f32.mrf.mxu0
    %v540 = vadd.f32 0.0, %v539
    %v541 = vpop.f32.mrf.mxu0
    %542 = vmatprep.mubr.f32.mxu0 0.0
    %543 = vmatmul.mubr.f32.gmra.mxu0 %v422
    %v544 = vpop.f32.mrf.mxu0
    %v545 = vadd.f32 0.0, %v544
    %v546 = vpop.f32.mrf.mxu0
    %547 = vmatprep.mubr.f32.mxu0 0.0
    %548 = vmatmul.mubr.f32.gmra.mxu0 %v423
    %v549 = vpop.f32.mrf.mxu0
    %v550 = vadd.f32 0.0, %v549
    %v551 = vpop.f32.mrf.mxu0
    %552 = vmatprep.mubr.f32.mxu0 0.0
    %553 = vmatmul.mubr.f32.gmra.mxu0 %v424
    %v554 = vpop.f32.mrf.mxu0
    %v555 = vadd.f32 0.0, %v554
    %v556 = vpop.f32.mrf.mxu0
    %557 = vmatprep.mubr.f32.mxu0 0.0
    %558 = vmatmul.mubr.f32.gmra.mxu0 %v425
    %v559 = vpop.f32.mrf.mxu0
    %v560 = vadd.f32 0.0, %v559
    %v561 = vpop.f32.mrf.mxu0
    %562 = vmatprep.mubr.f32.mxu0 0.0
    %563 = vmatmul.mubr.f32.gmra.mxu0 %v426
    %v564 = vpop.f32.mrf.mxu0
    %v565 = vadd.f32 0.0, %v564
    %v566 = vpop.f32.mrf.mxu0
    %567 = vmatprep.mubr.f32.mxu0 0.0
    %568 = vmatmul.mubr.f32.gmra.mxu0 %v427
    %v569 = vpop.f32.mrf.mxu0
    %v570 = vadd.f32 0.0, %v569
    %v571 = vpop.f32.mrf.mxu0
    %572 = vmatprep.mubr.f32.mxu0 0.0
    %573 = vmatmul.mubr.f32.gmra.mxu0 %v428
    %v574 = vpop.f32.mrf.mxu0
    %v575 = vadd.f32 0.0, %v574
    %v576 = vpop.f32.mrf.mxu0
    %577 = vmatprep.mubr.f32.mxu0 0.0
    %578 = vmatmul.mubr.f32.gmra.mxu0 %v429
    %v579 = vpop.f32.mrf.mxu0
    %v580 = vadd.f32 0.0, %v579
    %v581 = vpop.f32.mrf.mxu0
    %582 = vmatprep.mubr.f32.mxu0 0.0
    %583 = vmatmul.mubr.f32.gmra.mxu0 %v430
    %v584 = vpop.f32.mrf.mxu0
    %v585 = vadd.f32 0.0, %v584
    %v586 = vpop.f32.mrf.mxu0
    %587 = vmatprep.mubr.f32.mxu0 0.0
    %588 = vmatmul.mubr.f32.gmra.mxu0 %v431
    %v589 = vpop.f32.mrf.mxu0
    %v590 = vadd.f32 0.0, %v589
    %v591 = vpop.f32.mrf.mxu0
    %592 = vdwg.mxu0
    %v593 = vpack.c.bf16 %v520, %v515
    %v594 = vpack.c.bf16 %v530, %v525
    %v595 = vpack.c.bf16 %v540, %v535
    %v596 = vpack.c.bf16 %v550, %v545
    %v597 = vpack.c.bf16 %v560, %v555
    %v598 = vpack.c.bf16 %v570, %v565
    %v599 = vpack.c.bf16 %v580, %v575
    %v600 = vpack.c.bf16 %v590, %v585
    %v609 = vunpack.c.l.b16 %v593
    %v610 = vunpack.c.h.b16 %v593
    %v611 = vunpack.c.l.b16 %v594
    %v612 = vunpack.c.h.b16 %v594
    %v613 = vunpack.c.l.b16 %v595
    %v614 = vunpack.c.h.b16 %v595
    %v615 = vunpack.c.l.b16 %v596
    %v616 = vunpack.c.h.b16 %v596
    %v617 = vunpack.c.l.b16 %v597
    %v618 = vunpack.c.h.b16 %v597
    %v619 = vunpack.c.l.b16 %v598
    %v620 = vunpack.c.h.b16 %v598
    %v621 = vunpack.c.l.b16 %v599
    %v622 = vunpack.c.h.b16 %v599
    %v623 = vunpack.c.l.b16 %v600
    %v624 = vunpack.c.h.b16 %v600
    %v625 = vpack.c.b16 %v609, %v609
    %v626 = vpack.c.b16 %v610, %v610
    %v627 = vpack.c.b16 %v611, %v611
    %v628 = vpack.c.b16 %v612, %v612
    %v629 = vpack.c.b16 %v613, %v613
    %v630 = vpack.c.b16 %v614, %v614
    %v631 = vpack.c.b16 %v615, %v615
    %v632 = vpack.c.b16 %v616, %v616
    %v633 = vpack.c.b16 %v617, %v617
    %v634 = vpack.c.b16 %v618, %v618
    %v635 = vpack.c.b16 %v619, %v619
    %v636 = vpack.c.b16 %v620, %v620
    %v637 = vpack.c.b16 %v621, %v621
    %v638 = vpack.c.b16 %v622, %v622
    %v639 = vpack.c.b16 %v623, %v623
    %v640 = vpack.c.b16 %v624, %v624
    %657 = vst [vmem:[%s5] sm:$0xf] %v625
    %658 = vst [vmem:[%s5 + $0x4] sm:$0xf] %v626
    %659 = vst [vmem:[%s5 + $0x8] sm:$0xf] %v627
    %660 = vst [vmem:[%s5 + $0xc] sm:$0xf] %v628
    %661 = vst [vmem:[%s5 + $0x10] sm:$0xf] %v629
    %662 = vst [vmem:[%s5 + $0x14] sm:$0xf] %v630
    %663 = vst [vmem:[%s5 + $0x18] sm:$0xf] %v631
    %664 = vst [vmem:[%s5 + $0x1c] sm:$0xf] %v632
    %665 = vst [vmem:[%s5 + $0x20] sm:$0xf] %v633
    %666 = vst [vmem:[%s5 + $0x24] sm:$0xf] %v634
    %667 = vst [vmem:[%s5 + $0x28] sm:$0xf] %v635
    %668 = vst [vmem:[%s5 + $0x2c] sm:$0xf] %v636
    %669 = vst [vmem:[%s5 + $0x30] sm:$0xf] %v637
    %670 = vst [vmem:[%s5 + $0x34] sm:$0xf] %v638
    %671 = vst [vmem:[%s5 + $0x38] sm:$0xf] %v639
    %672 = vst [vmem:[%s5 + $0x3c] sm:$0xf] %v640
  $region29: #{synaptic_gnn.2} parent=0 // pred_fallthru
    _
  // Predicated region
  $region30: #{synaptic_gnn.2} parent=0 // pred_check
    _
  $region31: #{synaptic_gnn.2} parent=0 // pred_check_branch
    %674 = sbr.rel (0) target = $region33
  $region32: #{synaptic_gnn.2} parent=0 // pred_region
    _
  $region33: #{synaptic_gnn.2} parent=0 // pred_fallthru
    _
  // Predicated region
  $region34: #{synaptic_gnn.2} parent=0 // pred_check
    _
  $region35: #{synaptic_gnn.2} parent=0 // pred_check_branch
    %676 = sbr.rel (0) target = $region37
  $region36: #{synaptic_gnn.2} parent=0 // pred_region
    _
  $region37: #{synaptic_gnn.2} parent=0 // pred_fallthru
    _

// kernel: synaptic_gnn.3
$region0: #{synaptic_gnn.3}
  #allocation0 [shape = 'u32[]', space=smem, size = 0x4, offset = 0x4, fixed_abs, tag = 'smem constant byte address 0x4 - core index']
  #allocation1 [shape = 'u32[144,128]{1,0:T(1,128)}', space=vmem, size = 0x12000, scoped, tag = 'internal scratch']
  #allocation2 [shape = 'f32[128,128]{1,0:T(8,128)}', space=vmem, size = 0x10000, scoped, tag = 'scratch operand']
  %s0 = inlined_call_operand.vmem [shape: s8[128,128], index: 0, kind: input, shape index: {}]
  %s1 = inlined_call_operand.vmem [shape: bf16[128,128], index: 1, kind: input, shape index: {}]
  %s2 = inlined_call_operand.vmem [shape: f32[128,1], index: 2, kind: input, shape index: {}]
  %s3 = inlined_call_operand.vmem [shape: f32[1,128], index: 3, kind: input, shape index: {}]
  %s4 = inlined_call_operand.vmem [shape: f32[128,128], index: 4, kind: output, shape index: {}]
  %s5 = sld [smem:[#allocation0]]
  $region34: #{synaptic_gnn.3} parent=0
    _
  %s7 = ssub.s32 1, %s5
  %s8 = scalar_select 0, %s7, %s5
  // Predicated region
  $region2: #{synaptic_gnn.3} parent=0 // pred_check
    _
  $region3: #{synaptic_gnn.3} parent=0 // pred_check_branch
    %10 = sbr.rel (0) target = $region5
  $region4: #{synaptic_gnn.3} parent=0 // pred_region
    _
  $region5: #{synaptic_gnn.3} parent=0 // pred_fallthru
    _
  // Predicated region
  $region6: #{synaptic_gnn.3} parent=0 // pred_check
    _
  $region7: #{synaptic_gnn.3} parent=0 // pred_check_branch
    %12 = sbr.rel (0) target = $region9
  $region8: #{synaptic_gnn.3} parent=0 // pred_region
    _
  $region9: #{synaptic_gnn.3} parent=0 // pred_fallthru
    _
  // Predicated region
  $region10: #{synaptic_gnn.3} parent=0 // pred_check
    _
  $region11: #{synaptic_gnn.3} parent=0 // pred_check_branch
    %14 = sbr.rel (0) target = $region13
  $region12: #{synaptic_gnn.3} parent=0 // pred_region
    _
  $region13: #{synaptic_gnn.3} parent=0 // pred_fallthru
    _
  // Predicated region
  $region14: #{synaptic_gnn.3} parent=0 // pred_check
    _
  $region15: #{synaptic_gnn.3} parent=0 // pred_check_branch
    %16 = sbr.rel (0) target = $region17
  $region16: #{synaptic_gnn.3} parent=0 // pred_region
    _
  $region17: #{synaptic_gnn.3} parent=0 // pred_fallthru
    _
  %p18 = scmp.eq.s32.totalorder 0, 0
  // Predicated region
  $region18: #{synaptic_gnn.3} parent=0 // pred_check
    %p19 = pneg %p18
  $region19: #{synaptic_gnn.3} parent=0 // pred_check_branch
    %21 = sbr.rel (%p19) target = $region21
  $region20: #{synaptic_gnn.3} parent=0 // pred_region
    %22 = vst [vmem:[#allocation2] sm:$0xff] 0.0
    %23 = vst [vmem:[#allocation2 + $0x8] sm:$0xff] 0.0
    %24 = vst [vmem:[#allocation2 + $0x10] sm:$0xff] 0.0
    %25 = vst [vmem:[#allocation2 + $0x18] sm:$0xff] 0.0
    %26 = vst [vmem:[#allocation2 + $0x20] sm:$0xff] 0.0
    %27 = vst [vmem:[#allocation2 + $0x28] sm:$0xff] 0.0
    %28 = vst [vmem:[#allocation2 + $0x30] sm:$0xff] 0.0
    %29 = vst [vmem:[#allocation2 + $0x38] sm:$0xff] 0.0
    %30 = vst [vmem:[#allocation2 + $0x40] sm:$0xff] 0.0
    %31 = vst [vmem:[#allocation2 + $0x48] sm:$0xff] 0.0
    %32 = vst [vmem:[#allocation2 + $0x50] sm:$0xff] 0.0
    %33 = vst [vmem:[#allocation2 + $0x58] sm:$0xff] 0.0
    %34 = vst [vmem:[#allocation2 + $0x60] sm:$0xff] 0.0
    %35 = vst [vmem:[#allocation2 + $0x68] sm:$0xff] 0.0
    %36 = vst [vmem:[#allocation2 + $0x70] sm:$0xff] 0.0
    %37 = vst [vmem:[#allocation2 + $0x78] sm:$0xff] 0.0
  $region21: #{synaptic_gnn.3} parent=0 // pred_fallthru
    _
  %v38 = vld [vmem:[#allocation2] sm:$0xff]
  %v39 = vld [vmem:[#allocation2 + $0x8] sm:$0xff]
  %v40 = vld [vmem:[#allocation2 + $0x10] sm:$0xff]
  %v41 = vld [vmem:[#allocation2 + $0x18] sm:$0xff]
  %v42 = vld [vmem:[#allocation2 + $0x20] sm:$0xff]
  %v43 = vld [vmem:[#allocation2 + $0x28] sm:$0xff]
  %v44 = vld [vmem:[#allocation2 + $0x30] sm:$0xff]
  %v45 = vld [vmem:[#allocation2 + $0x38] sm:$0xff]
  %v46 = vld [vmem:[#allocation2 + $0x40] sm:$0xff]
  %v47 = vld [vmem:[#allocation2 + $0x48] sm:$0xff]
  %v48 = vld [vmem:[#allocation2 + $0x50] sm:$0xff]
  %v49 = vld [vmem:[#allocation2 + $0x58] sm:$0xff]
  %v50 = vld [vmem:[#allocation2 + $0x60] sm:$0xff]
  %v51 = vld [vmem:[#allocation2 + $0x68] sm:$0xff]
  %v52 = vld [vmem:[#allocation2 + $0x70] sm:$0xff]
  %v53 = vld [vmem:[#allocation2 + $0x78] sm:$0xff]
  %v54 = vld [vmem:[%s0] sm:$0xff]
  %v55 = vld [vmem:[%s0 + $0x8] sm:$0xff]
  %v56 = vld [vmem:[%s0 + $0x10] sm:$0xff]
  %v57 = vld [vmem:[%s0 + $0x18] sm:$0xff]
  %v58 = vunpack.c.l.s8.bf16 %v54
  %v59 = vunpack.c.h.s8.bf16 %v54
  %v60 = vunpack.c.l.s8.bf16 %v55
  %v61 = vunpack.c.h.s8.bf16 %v55
  %v62 = vunpack.c.l.s8.bf16 %v56
  %v63 = vunpack.c.h.s8.bf16 %v56
  %v64 = vunpack.c.l.s8.bf16 %v57
  %v65 = vunpack.c.h.s8.bf16 %v57
  %v66 = vld [vmem:[%s1] sm:$0xf]
  %v67 = vld [vmem:[%s1 + $0x4] sm:$0xf]
  %v68 = vld [vmem:[%s1 + $0x8] sm:$0xf]
  %v69 = vld [vmem:[%s1 + $0xc] sm:$0xf]
  %v70 = vld [vmem:[%s1 + $0x10] sm:$0xf]
  %v71 = vld [vmem:[%s1 + $0x14] sm:$0xf]
  %v72 = vld [vmem:[%s1 + $0x18] sm:$0xf]
  %v73 = vld [vmem:[%s1 + $0x1c] sm:$0xf]
  %v74 = vld [vmem:[%s1 + $0x20] sm:$0xf]
  %v75 = vld [vmem:[%s1 + $0x24] sm:$0xf]
  %v76 = vld [vmem:[%s1 + $0x28] sm:$0xf]
  %v77 = vld [vmem:[%s1 + $0x2c] sm:$0xf]
  %v78 = vld [vmem:[%s1 + $0x30] sm:$0xf]
  %v79 = vld [vmem:[%s1 + $0x34] sm:$0xf]
  %v80 = vld [vmem:[%s1 + $0x38] sm:$0xf]
  %v81 = vld [vmem:[%s1 + $0x3c] sm:$0xf]
  %v98 = vunpack.c.l.b16 %v66
  %v99 = vunpack.c.l.b16 %v67
  %v100 = vunpack.c.l.b16 %v68
  %v101 = vunpack.c.l.b16 %v69
  %v102 = vunpack.c.l.b16 %v70
  %v103 = vunpack.c.l.b16 %v71
  %v104 = vunpack.c.l.b16 %v72
  %v105 = vunpack.c.l.b16 %v73
  %v106 = vunpack.c.l.b16 %v74
  %v107 = vunpack.c.l.b16 %v75
  %v108 = vunpack.c.l.b16 %v76
  %v109 = vunpack.c.l.b16 %v77
  %v110 = vunpack.c.l.b16 %v78
  %v111 = vunpack.c.l.b16 %v79
  %v112 = vunpack.c.l.b16 %v80
  %v113 = vunpack.c.l.b16 %v81
  %v114 = vpack.c.b16 %v99, %v98
  %v115 = vpack.c.b16 %v101, %v100
  %v116 = vpack.c.b16 %v103, %v102
  %v117 = vpack.c.b16 %v105, %v104
  %v118 = vpack.c.b16 %v107, %v106
  %v119 = vpack.c.b16 %v109, %v108
  %v120 = vpack.c.b16 %v111, %v110
  %v121 = vpack.c.b16 %v113, %v112
  %130 = vmatprep.subr.bf16.mxu0 0
  %131 = vmatpush1.bf16.msra.mxu0 %v121
  %132 = vmatprep.subr.bf16.mxu0 0
  %133 = vmatpush1.bf16.msra.mxu0 %v120
  %134 = vmatprep.subr.bf16.mxu0 0
  %135 = vmatpush1.bf16.msra.mxu0 %v119
  %136 = vmatprep.subr.bf16.mxu0 0
  %137 = vmatpush1.bf16.msra.mxu0 %v118
  %138 = vmatprep.subr.bf16.mxu0 0
  %139 = vmatpush1.bf16.msra.mxu0 %v117
  %140 = vmatprep.subr.bf16.mxu0 0
  %141 = vmatpush1.bf16.msra.mxu0 %v116
  %142 = vmatprep.subr.bf16.mxu0 0
  %143 = vmatpush1.bf16.msra.mxu0 %v115
  %144 = vmatprep.subr.bf16.mxu0 0
  %145 = vmatpush1.bf16.msra.mxu0 %v114
  %146 = vmatprep.subr.bf16.mxu0 0
  %147 = vmatpush2.bf16.msra.mxu0 0
  %148 = vmatprep.subr.bf16.mxu0 0
  %149 = vmatpush2.bf16.msra.mxu0 0
  %150 = vmatprep.subr.bf16.mxu0 0
  %151 = vmatpush2.bf16.msra.mxu0 0
  %152 = vmatprep.subr.bf16.mxu0 0
  %153 = vmatpush2.bf16.msra.mxu0 0
  %154 = vmatprep.subr.bf16.mxu0 0
  %155 = vmatpush2.bf16.msra.mxu0 0
  %156 = vmatprep.subr.bf16.mxu0 0
  %157 = vmatpush2.bf16.msra.mxu0 0
  %158 = vmatprep.subr.bf16.mxu0 0
  %159 = vmatpush2.bf16.msra.mxu0 0
  %160 = vmatprep.subr.bf16.mxu0 0
  %161 = vmatpush2.bf16.msra.mxu0 0
  %162 = vmatprep.mubr.bf16.mxu0 0
  %163 = vmatmul.mubr.bf16.gmra.mxu0 %v58
  %v164 = vpop.f32.mrf.mxu0
  %v165 = vadd.f32 0.0, %v164
  %v166 = vpop.f32.mrf.mxu0
  %v167 = vpop.f32.mrf.mxu0
  %v168 = vadd.f32 0.0, %v167
  %v169 = vpop.f32.mrf.mxu0
  %170 = vmatprep.mubr.bf16.mxu0 0
  %171 = vmatmul.mubr.bf16.gmra.mxu0 %v59
  %v172 = vpop.f32.mrf.mxu0
  %v173 = vadd.f32 0.0, %v172
  %v174 = vpop.f32.mrf.mxu0
  %v175 = vpop.f32.mrf.mxu0
  %v176 = vadd.f32 0.0, %v175
  %v177 = vpop.f32.mrf.mxu0
  %178 = vmatprep.mubr.bf16.mxu0 0
  %179 = vmatmul.mubr.bf16.gmra.mxu0 %v60
  %v180 = vpop.f32.mrf.mxu0
  %v181 = vadd.f32 0.0, %v180
  %v182 = vpop.f32.mrf.mxu0
  %v183 = vpop.f32.mrf.mxu0
  %v184 = vadd.f32 0.0, %v183
  %v185 = vpop.f32.mrf.mxu0
  %186 = vmatprep.mubr.bf16.mxu0 0
  %187 = vmatmul.mubr.bf16.gmra.mxu0 %v61
  %v188 = vpop.f32.mrf.mxu0
  %v189 = vadd.f32 0.0, %v188
  %v190 = vpop.f32.mrf.mxu0
  %v191 = vpop.f32.mrf.mxu0
  %v192 = vadd.f32 0.0, %v191
  %v193 = vpop.f32.mrf.mxu0
  %194 = vmatprep.mubr.bf16.mxu0 0
  %195 = vmatmul.mubr.bf16.gmra.mxu0 %v62
  %v196 = vpop.f32.mrf.mxu0
  %v197 = vadd.f32 0.0, %v196
  %v198 = vpop.f32.mrf.mxu0
  %v199 = vpop.f32.mrf.mxu0
  %v200 = vadd.f32 0.0, %v199
  %v201 = vpop.f32.mrf.mxu0
  %202 = vmatprep.mubr.bf16.mxu0 0
  %203 = vmatmul.mubr.bf16.gmra.mxu0 %v63
  %v204 = vpop.f32.mrf.mxu0
  %v205 = vadd.f32 0.0, %v204
  %v206 = vpop.f32.mrf.mxu0
  %v207 = vpop.f32.mrf.mxu0
  %v208 = vadd.f32 0.0, %v207
  %v209 = vpop.f32.mrf.mxu0
  %210 = vmatprep.mubr.bf16.mxu0 0
  %211 = vmatmul.mubr.bf16.gmra.mxu0 %v64
  %v212 = vpop.f32.mrf.mxu0
  %v213 = vadd.f32 0.0, %v212
  %v214 = vpop.f32.mrf.mxu0
  %v215 = vpop.f32.mrf.mxu0
  %v216 = vadd.f32 0.0, %v215
  %v217 = vpop.f32.mrf.mxu0
  %218 = vmatprep.mubr.bf16.mxu0 0
  %219 = vmatmul.mubr.bf16.gmra.mxu0 %v65
  %v220 = vpop.f32.mrf.mxu0
  %v221 = vadd.f32 0.0, %v220
  %v222 = vpop.f32.mrf.mxu0
  %v223 = vpop.f32.mrf.mxu0
  %v224 = vadd.f32 0.0, %v223
  %v225 = vpop.f32.mrf.mxu0
  %226 = vdwg.mxu0
  %v227 = vadd.f32 %v38, %v165
  %v228 = vadd.f32 %v39, %v168
  %v229 = vadd.f32 %v40, %v173
  %v230 = vadd.f32 %v41, %v176
  %v231 = vadd.f32 %v42, %v181
  %v232 = vadd.f32 %v43, %v184
  %v233 = vadd.f32 %v44, %v189
  %v234 = vadd.f32 %v45, %v192
  %v235 = vadd.f32 %v46, %v197
  %v236 = vadd.f32 %v47, %v200
  %v237 = vadd.f32 %v48, %v205
  %v238 = vadd.f32 %v49, %v208
  %v239 = vadd.f32 %v50, %v213
  %v240 = vadd.f32 %v51, %v216
  %v241 = vadd.f32 %v52, %v221
  %v242 = vadd.f32 %v53, %v224
  %243 = vst [vmem:[#allocation2] sm:$0xff] %v227
  %244 = vst [vmem:[#allocation2 + $0x8] sm:$0xff] %v228
  %245 = vst [vmem:[#allocation2 + $0x10] sm:$0xff] %v229
  %246 = vst [vmem:[#allocation2 + $0x18] sm:$0xff] %v230
  %247 = vst [vmem:[#allocation2 + $0x20] sm:$0xff] %v231
  %248 = vst [vmem:[#allocation2 + $0x28] sm:$0xff] %v232
  %249 = vst [vmem:[#allocation2 + $0x30] sm:$0xff] %v233
  %250 = vst [vmem:[#allocation2 + $0x38] sm:$0xff] %v234
  %251 = vst [vmem:[#allocation2 + $0x40] sm:$0xff] %v235
  %252 = vst [vmem:[#allocation2 + $0x48] sm:$0xff] %v236
  %253 = vst [vmem:[#allocation2 + $0x50] sm:$0xff] %v237
  %254 = vst [vmem:[#allocation2 + $0x58] sm:$0xff] %v238
  %255 = vst [vmem:[#allocation2 + $0x60] sm:$0xff] %v239
  %256 = vst [vmem:[#allocation2 + $0x68] sm:$0xff] %v240
  %257 = vst [vmem:[#allocation2 + $0x70] sm:$0xff] %v241
  %258 = vst [vmem:[#allocation2 + $0x78] sm:$0xff] %v242
  // Predicated region
  $region22: #{synaptic_gnn.3} parent=0 // pred_check
    %p259 = pneg %p18
  $region23: #{synaptic_gnn.3} parent=0 // pred_check_branch
    %261 = sbr.rel (%p259) target = $region25
  $region24: #{synaptic_gnn.3} parent=0 // pred_region
    %v262 = vld [vmem:[#allocation2] sm:$0xff]
    %v263 = vld [vmem:[#allocation2 + $0x8] sm:$0xff]
    %v264 = vld [vmem:[#allocation2 + $0x10] sm:$0xff]
    %v265 = vld [vmem:[#allocation2 + $0x18] sm:$0xff]
    %v266 = vld [vmem:[#allocation2 + $0x20] sm:$0xff]
    %v267 = vld [vmem:[#allocation2 + $0x28] sm:$0xff]
    %v268 = vld [vmem:[#allocation2 + $0x30] sm:$0xff]
    %v269 = vld [vmem:[#allocation2 + $0x38] sm:$0xff]
    %v270 = vld [vmem:[#allocation2 + $0x40] sm:$0xff]
    %v271 = vld [vmem:[#allocation2 + $0x48] sm:$0xff]
    %v272 = vld [vmem:[#allocation2 + $0x50] sm:$0xff]
    %v273 = vld [vmem:[#allocation2 + $0x58] sm:$0xff]
    %v274 = vld [vmem:[#allocation2 + $0x60] sm:$0xff]
    %v275 = vld [vmem:[#allocation2 + $0x68] sm:$0xff]
    %v276 = vld [vmem:[#allocation2 + $0x70] sm:$0xff]
    %v277 = vld [vmem:[#allocation2 + $0x78] sm:$0xff]
    %v278 = vld [vmem:[%s2] sm:$0xff]
    %v279 = vld [vmem:[%s2 + $0x8] sm:$0xff]
    %v280 = vld [vmem:[%s2 + $0x10] sm:$0xff]
    %v281 = vld [vmem:[%s2 + $0x18] sm:$0xff]
    %v282 = vld [vmem:[%s2 + $0x20] sm:$0xff]
    %v283 = vld [vmem:[%s2 + $0x28] sm:$0xff]
    %v284 = vld [vmem:[%s2 + $0x30] sm:$0xff]
    %v285 = vld [vmem:[%s2 + $0x38] sm:$0xff]
    %v286 = vld [vmem:[%s2 + $0x40] sm:$0xff]
    %v287 = vld [vmem:[%s2 + $0x48] sm:$0xff]
    %v288 = vld [vmem:[%s2 + $0x50] sm:$0xff]
    %v289 = vld [vmem:[%s2 + $0x58] sm:$0xff]
    %v290 = vld [vmem:[%s2 + $0x60] sm:$0xff]
    %v291 = vld [vmem:[%s2 + $0x68] sm:$0xff]
    %v292 = vld [vmem:[%s2 + $0x70] sm:$0xff]
    %v293 = vld [vmem:[%s2 + $0x78] sm:$0xff]
    %295 = vset.pattern.permute.xlu0 0
    %296 = vperm.xlu0 %295, %v278
    %v297 = vpop.permute.xlu0 %296
    %300 = vset.pattern.permute.xlu0 0
    %301 = vperm.xlu0 %300, %v279
    %v302 = vpop.permute.xlu0 %301
    %305 = vset.pattern.permute.xlu0 0
    %306 = vperm.xlu0 %305, %v280
    %v307 = vpop.permute.xlu0 %306
    %310 = vset.pattern.permute.xlu0 0
    %311 = vperm.xlu0 %310, %v281
    %v312 = vpop.permute.xlu0 %311
    %315 = vset.pattern.permute.xlu0 0
    %316 = vperm.xlu0 %315, %v282
    %v317 = vpop.permute.xlu0 %316
    %320 = vset.pattern.permute.xlu0 0
    %321 = vperm.xlu0 %320, %v283
    %v322 = vpop.permute.xlu0 %321
    %325 = vset.pattern.permute.xlu0 0
    %326 = vperm.xlu0 %325, %v284
    %v327 = vpop.permute.xlu0 %326
    %330 = vset.pattern.permute.xlu0 0
    %331 = vperm.xlu0 %330, %v285
    %v332 = vpop.permute.xlu0 %331
    %335 = vset.pattern.permute.xlu0 0
    %336 = vperm.xlu0 %335, %v286
    %v337 = vpop.permute.xlu0 %336
    %340 = vset.pattern.permute.xlu0 0
    %341 = vperm.xlu0 %340, %v287
    %v342 = vpop.permute.xlu0 %341
    %345 = vset.pattern.permute.xlu0 0
    %346 = vperm.xlu0 %345, %v288
    %v347 = vpop.permute.xlu0 %346
    %350 = vset.pattern.permute.xlu0 0
    %351 = vperm.xlu0 %350, %v289
    %v352 = vpop.permute.xlu0 %351
    %355 = vset.pattern.permute.xlu0 0
    %356 = vperm.xlu0 %355, %v290
    %v357 = vpop.permute.xlu0 %356
    %360 = vset.pattern.permute.xlu0 0
    %361 = vperm.xlu0 %360, %v291
    %v362 = vpop.permute.xlu0 %361
    %365 = vset.pattern.permute.xlu0 0
    %366 = vperm.xlu0 %365, %v292
    %v367 = vpop.permute.xlu0 %366
    %370 = vset.pattern.permute.xlu0 0
    %371 = vperm.xlu0 %370, %v293
    %v372 = vpop.permute.xlu0 %371
    %v374 = vmul.f32 %v262, %v297
    %v375 = vmul.f32 %v263, %v302
    %v376 = vmul.f32 %v264, %v307
    %v377 = vmul.f32 %v265, %v312
    %v378 = vmul.f32 %v266, %v317
    %v379 = vmul.f32 %v267, %v322
    %v380 = vmul.f32 %v268, %v327
    %v381 = vmul.f32 %v269, %v332
    %v382 = vmul.f32 %v270, %v337
    %v383 = vmul.f32 %v271, %v342
    %v384 = vmul.f32 %v272, %v347
    %v385 = vmul.f32 %v273, %v352
    %v386 = vmul.f32 %v274, %v357
    %v387 = vmul.f32 %v275, %v362
    %v388 = vmul.f32 %v276, %v367
    %v389 = vmul.f32 %v277, %v372
    %v390 = vld [vmem:[%s3] sm:$0x1]
    %v392 = vlaneseq
    %v393 = vshrl.u32 %v392, 7
    %v394 = vsub.s32 0, %v393
    %v395 = vrot.slane %v390, %v394
    %v397 = vadd.f32 %v374, %v395
    %v398 = vadd.f32 %v375, %v395
    %v399 = vadd.f32 %v376, %v395
    %v400 = vadd.f32 %v377, %v395
    %v401 = vadd.f32 %v378, %v395
    %v402 = vadd.f32 %v379, %v395
    %v403 = vadd.f32 %v380, %v395
    %v404 = vadd.f32 %v381, %v395
    %v405 = vadd.f32 %v382, %v395
    %v406 = vadd.f32 %v383, %v395
    %v407 = vadd.f32 %v384, %v395
    %v408 = vadd.f32 %v385, %v395
    %v409 = vadd.f32 %v386, %v395
    %v410 = vadd.f32 %v387, %v395
    %v411 = vadd.f32 %v388, %v395
    %v412 = vadd.f32 %v389, %v395
    %413 = vst [vmem:[%s4] sm:$0xff] %v397
    %414 = vst [vmem:[%s4 + $0x8] sm:$0xff] %v398
    %415 = vst [vmem:[%s4 + $0x10] sm:$0xff] %v399
    %416 = vst [vmem:[%s4 + $0x18] sm:$0xff] %v400
    %417 = vst [vmem:[%s4 + $0x20] sm:$0xff] %v401
    %418 = vst [vmem:[%s4 + $0x28] sm:$0xff] %v402
    %419 = vst [vmem:[%s4 + $0x30] sm:$0xff] %v403
    %420 = vst [vmem:[%s4 + $0x38] sm:$0xff] %v404
    %421 = vst [vmem:[%s4 + $0x40] sm:$0xff] %v405
    %422 = vst [vmem:[%s4 + $0x48] sm:$0xff] %v406
    %423 = vst [vmem:[%s4 + $0x50] sm:$0xff] %v407
    %424 = vst [vmem:[%s4 + $0x58] sm:$0xff] %v408
    %425 = vst [vmem:[%s4 + $0x60] sm:$0xff] %v409
    %426 = vst [vmem:[%s4 + $0x68] sm:$0xff] %v410
    %427 = vst [vmem:[%s4 + $0x70] sm:$0xff] %v411
    %428 = vst [vmem:[%s4 + $0x78] sm:$0xff] %v412
  $region25: #{synaptic_gnn.3} parent=0 // pred_fallthru
    _
  // Predicated region
  $region26: #{synaptic_gnn.3} parent=0 // pred_check
    _
  $region27: #{synaptic_gnn.3} parent=0 // pred_check_branch
    %430 = sbr.rel (0) target = $region29
  $region28: #{synaptic_gnn.3} parent=0 // pred_region
    _
  $region29: #{synaptic_gnn.3} parent=0 // pred_fallthru
    _
  // Predicated region
  $region30: #{synaptic_gnn.3} parent=0 // pred_check
    _
  $region31: #{synaptic_gnn.3} parent=0 // pred_check_branch
    %432 = sbr.rel (0) target = $region33
  $region32: #{synaptic_gnn.3} parent=0 // pred_region
    _
  $region33: #{synaptic_gnn.3} parent=0 // pred_fallthru
    _

</llo_original>
